<compile_context>
chip_gen: v7x
topology: tpu7x:2x2x1
jax: 0.10.0
libtpu: 0.0.40
codegen_flags: <defaults>
</compile_context>

<pallas_src>
import functools
import math

import jax
import jax.numpy as jnp
from jax.experimental import pallas as pl
from jax.experimental.pallas import tpu as pltpu


def _round_up(x, m):
    return ((x + m - 1) // m) * m


def _gat_kernel(alpha_slope, n_valid, tile_n,
                h_ref, ht_ref, w_ref, a_tgt_ref, a_self_ref,
                out_ref,
                et_ref, m_ref, l_ref, acc_ref):
    i = pl.program_id(0)

    @pl.when(i == 0)
    def _init():
        # e_t = (h[target] @ W) . a_tgt  -- scalar, shared by every node.
        wh_t = jnp.dot(ht_ref[...], w_ref[...],
                       preferred_element_type=jnp.float32)          # (1, F)
        et_ref[0] = jnp.sum(wh_t * a_tgt_ref[...])
        m_ref[...] = jnp.full_like(m_ref, -jnp.inf)
        l_ref[...] = jnp.zeros_like(l_ref)
        acc_ref[...] = jnp.zeros_like(acc_ref)

    # MXU: project this tile of nodes.
    wh = jnp.dot(h_ref[...], w_ref[...],
                 preferred_element_type=jnp.float32)                # (TN, F)
    # MXU: per-node "self" score term.
    e_s = jnp.dot(wh, a_self_ref[...],
                  preferred_element_type=jnp.float32)               # (TN, 1)

    e = et_ref[0] + e_s
    e = jnp.where(e > 0, e, alpha_slope * e)                        # LeakyReLU

    # Mask zero-padded rows (global row index >= n_valid).
    row = jax.lax.broadcasted_iota(jnp.int32, e.shape, 0) + i * tile_n
    e = jnp.where(row < n_valid, e, -1e30)

    # Online softmax update across node tiles.
    m_prev = m_ref[...]                                             # (1, 1)
    m_new = jnp.maximum(m_prev, jnp.max(e, axis=0, keepdims=True))
    scale = jnp.exp(m_prev - m_new)                                 # (1, 1)
    p = jnp.exp(e - m_new)                                          # (TN, 1)
    l_ref[...] = scale * l_ref[...] + jnp.sum(p, axis=0, keepdims=True)
    # MXU: p^T @ Wh (contract the node axis) -> (1, F)
    pw = jax.lax.dot_general(p, wh, (((0,), (0,)), ((), ())),
                             preferred_element_type=jnp.float32)
    acc_ref[...] = scale * acc_ref[...] + pw
    m_ref[...] = m_new

    @pl.when(i == pl.num_programs(0) - 1)
    def _finalize():
        h_prime = acc_ref[...] * pl.reciprocal(l_ref[...], approx=False)
        # ELU (exp(x)-1 form matches the reference module's default-alpha ELU).
        out_ref[...] = jnp.where(h_prime > 0, h_prime,
                                 jnp.exp(h_prime) - 1.0).astype(out_ref.dtype)


def gat_singular_forward(h, W, a, target_vertex, alpha_slope, *, tile_n=128):
    """h: (N, Fin), W: (Fin, Fout), a: (2*Fout, 1), target_vertex: int."""
    h = jnp.asarray(h, jnp.float32)
    W = jnp.asarray(W, jnp.float32)
    a = jnp.asarray(a, jnp.float32)

    n, f_in = h.shape
    f_out = W.shape[1]

    # Lane-dense feature padding (multiple of 128). Pad columns are exact zeros
    # all the way through the kernel and are sliced off at the end.
    f_pad = _round_up(f_out, 128)
    w_p = jnp.zeros((f_in, f_pad), jnp.float32).at[:, :f_out].set(W)
    a_tgt = jnp.zeros((1, f_pad), jnp.float32).at[0, :f_out].set(a[:f_out, 0])
    a_self = jnp.zeros((f_pad, 1), jnp.float32).at[:f_out, 0].set(a[f_out:, 0])

    # Node-axis tiling (online softmax over tiles, reduction axis = grid axis).
    tile_n = _round_up(max(8, min(tile_n, _round_up(n, 8))), 8)
    n_pad = _round_up(n, tile_n)
    h_p = h if n_pad == n else jnp.pad(h, ((0, n_pad - n), (0, 0)))

    # Target row extracted once (layout plumbing, not compute hoisting).
    h_t = jax.lax.dynamic_slice_in_dim(h, target_vertex, 1, axis=0)  # (1, Fin)

    grid = (n_pad // tile_n,)
    kernel = functools.partial(_gat_kernel, float(alpha_slope), n, tile_n)

    out = pl.pallas_call(
        kernel,
        out_shape=jax.ShapeDtypeStruct((1, f_pad), jnp.float32),
        grid_spec=pltpu.PrefetchScalarGridSpec(
            num_scalar_prefetch=0,
            grid=grid,
            in_specs=[
                pl.BlockSpec((tile_n, f_in), lambda i: (i, 0)),    # h tile
                pl.BlockSpec((1, f_in), lambda i: (0, 0)),         # h[target]
                pl.BlockSpec((f_in, f_pad), lambda i: (0, 0)),     # W (resident)
                pl.BlockSpec((1, f_pad), lambda i: (0, 0)),        # a target half
                pl.BlockSpec((f_pad, 1), lambda i: (0, 0)),        # a self half
            ],
            out_specs=pl.BlockSpec((1, f_pad), lambda i: (0, 0)),
            scratch_shapes=[
                pltpu.SMEM((1,), jnp.float32),         # e_t scalar
                pltpu.VMEM((1, 1), jnp.float32),       # running max m
                pltpu.VMEM((1, 1), jnp.float32),       # running sum l
                pltpu.VMEM((1, f_pad), jnp.float32),   # running weighted acc
            ],
        ),
        compiler_params=pltpu.CompilerParams(
            dimension_semantics=("arbitrary",)),
    )(h_p, h_t, w_p, a_tgt, a_self)

    return out[:, :f_out]


def _xavier_uniform(key, shape, gain):
    fan_in, fan_out = shape
    bound = gain * math.sqrt(6.0 / (fan_in + fan_out))
    return jax.random.uniform(key, shape, jnp.float32, -bound, bound)


def _reference(h, W, a, target_vertex, alpha_slope):
    Wh = h @ W
    N = h.shape[0]
    expanded = jnp.broadcast_to(Wh[target_vertex][None, :], (N, Wh.shape[1]))
    all_comb = jnp.concatenate([expanded, Wh], axis=1)
    e = jnp.squeeze(all_comb @ a, axis=1)
    e = jnp.where(e > 0, e, alpha_slope * e)
    attn = jax.nn.softmax(e, axis=0)
    h_prime = attn[None, :] @ Wh
    return jnp.where(h_prime > 0, h_prime, jnp.exp(h_prime) - 1.0)


if __name__ == "__main__":
    alpha_slope = 0.2
    key = jax.random.PRNGKey(0)

    # Case 1: small single-tile instance (N=8, Fin=Fout=32).
    n, f_in, f_out, tv = 8, 32, 32, 3
    k1, k2, k3, key = jax.random.split(key, 4)
    h = jax.random.normal(k1, (n, f_in), jnp.float32)
    W = _xavier_uniform(k2, (f_in, f_out), 1.414)
    a = _xavier_uniform(k3, (2 * f_out, 1), 1.414)
    out = jax.block_until_ready(gat_singular_forward(h, W, a, tv, alpha_slope))
    ref = _reference(h, W, a, tv, alpha_slope)
    assert out.shape == (1, f_out)
    assert jnp.allclose(out, ref, atol=1e-4, rtol=1e-4), "case1 mismatch"

    # Case 2: multi-tile N (exercises the online-softmax grid) with Fout not a
    # multiple of 128 (exercises the lane-padding path).
    n, f_in, f_out, tv = 300, 32, 48, 257
    k1, k2, k3, key = jax.random.split(key, 4)
    h = jax.random.normal(k1, (n, f_in), jnp.float32)
    W = _xavier_uniform(k2, (f_in, f_out), 1.414)
    a = _xavier_uniform(k3, (2 * f_out, 1), 1.414)
    out = jax.block_until_ready(gat_singular_forward(h, W, a, tv, alpha_slope))
    ref = _reference(h, W, a, tv, alpha_slope)
    assert out.shape == (1, f_out)
    assert jnp.allclose(out, ref, atol=1e-4, rtol=1e-4), "case2 mismatch"

    print("KERNEL_OK")
</pallas_src>

<mosaic_0001>
module attributes {stable_mosaic.version = 11 : i64} {
  func.func @_gat_kernel(%arg0: i32, %arg1: memref<8x32xf32, #tpu.memory_space<vmem>>, %arg2: memref<1x32xf32, #tpu.memory_space<vmem>>, %arg3: memref<32x128xf32, #tpu.memory_space<vmem>>, %arg4: memref<1x128xf32, #tpu.memory_space<vmem>>, %arg5: memref<128x1xf32, #tpu.memory_space<vmem>>, %arg6: memref<1x128xf32, #tpu.memory_space<vmem>>, %arg7: memref<1xf32, #tpu.memory_space<smem>>, %arg8: memref<1x1xf32, #tpu.memory_space<vmem>>, %arg9: memref<1x1xf32, #tpu.memory_space<vmem>>, %arg10: memref<1x128xf32, #tpu.memory_space<vmem>>) attributes {dimension_semantics = [#tpu.dimension_semantics<arbitrary>], iteration_bounds = array<i64: 1>, scalar_prefetch = 0 : i64, scratch_operands = 4 : i64, tpu.core_type = #tpu.core_type<tc>, window_params = [{transform_indices = @transform_0, window_bounds = array<i64: 8, 32>}, {pipeline_mode = #tpu.pipeline_mode<synchronous>, transform_indices = @transform_1, window_bounds = array<i64: 1, 32>}, {pipeline_mode = #tpu.pipeline_mode<synchronous>, transform_indices = @transform_2, window_bounds = array<i64: 32, 128>}, {pipeline_mode = #tpu.pipeline_mode<synchronous>, transform_indices = @transform_3, window_bounds = array<i64: 1, 128>}, {pipeline_mode = #tpu.pipeline_mode<synchronous>, transform_indices = @transform_4, window_bounds = array<i64: 128, 1>}, {pipeline_mode = #tpu.pipeline_mode<synchronous>, transform_indices = @transform_5, window_bounds = array<i64: 1, 128>}]} {
    %c0_i32 = arith.constant 0 : i32
    %0 = arith.cmpi eq, %arg0, %c0_i32 : i32
    %1 = arith.extui %0 : i1 to i32
    %c0_i32_0 = arith.constant 0 : i32
    %2 = arith.cmpi ne, %1, %c0_i32_0 : i32
    scf.if %2 {
      %c0_29 = arith.constant 0 : index
      %c0_30 = arith.constant 0 : index
      %49 = vector.load %arg2[%c0_29, %c0_30] : memref<1x32xf32, #tpu.memory_space<vmem>>, vector<1x32xf32>
      %c0_31 = arith.constant 0 : index
      %c0_32 = arith.constant 0 : index
      %50 = vector.load %arg3[%c0_31, %c0_32] : memref<32x128xf32, #tpu.memory_space<vmem>>, vector<32x128xf32>
      %cst_33 = arith.constant dense<0.000000e+00> : vector<1x128xf32>
      %51 = tpu.matmul %49, %50, %cst_33 {dimension_numbers = #tpu.dot_dimension_numbers<[1], [0], [0], [1], [0, 0, 1, 1], [], []>} : vector<1x32xf32>, vector<32x128xf32>, vector<1x128xf32> -> vector<1x128xf32>
      %c0_34 = arith.constant 0 : index
      %c0_35 = arith.constant 0 : index
      %52 = vector.load %arg4[%c0_34, %c0_35] : memref<1x128xf32, #tpu.memory_space<vmem>>, vector<1x128xf32>
      %53 = arith.mulf %51, %52 : vector<1x128xf32>
      %54 = vector.shape_cast %53 : vector<1x128xf32> to vector<1x1x128xf32>
      %cst_36 = arith.constant dense<0.000000e+00> : vector<1xf32>
      %55 = vector.multi_reduction <add>, %54, %cst_36 [1, 2] : vector<1x1x128xf32> to vector<1xf32>
      %56 = vector.shape_cast %55 : vector<1xf32> to vector<1x1x1xf32>
      %57 = vector.extract %56[0, 0, 0] : f32 from vector<1x1x1xf32>
      %c0_37 = arith.constant 0 : index
      %58 = memref.load %arg7[%c0_37] : memref<1xf32, #tpu.memory_space<smem>>
      memref.store %57, %arg7[%c0_37] : memref<1xf32, #tpu.memory_space<smem>>
      %cst_38 = arith.constant 0xFF800000 : f32
      %59 = vector.broadcast %cst_38 : f32 to vector<1x1xf32>
      %c0_39 = arith.constant 0 : index
      %c0_40 = arith.constant 0 : index
      %60 = vector.load %arg8[%c0_39, %c0_40] : memref<1x1xf32, #tpu.memory_space<vmem>>, vector<1x1xf32>
      tpu.vector_store %arg8[%c0_39, %c0_40], %59 {strides = array<i32>} : memref<1x1xf32, #tpu.memory_space<vmem>>, vector<1x1xf32>,
      %cst_41 = arith.constant 0.000000e+00 : f32
      %61 = vector.broadcast %cst_41 : f32 to vector<1x1xf32>
      %c0_42 = arith.constant 0 : index
      %c0_43 = arith.constant 0 : index
      %62 = vector.load %arg9[%c0_42, %c0_43] : memref<1x1xf32, #tpu.memory_space<vmem>>, vector<1x1xf32>
      tpu.vector_store %arg9[%c0_42, %c0_43], %61 {strides = array<i32>} : memref<1x1xf32, #tpu.memory_space<vmem>>, vector<1x1xf32>,
      %cst_44 = arith.constant 0.000000e+00 : f32
      %63 = vector.broadcast %cst_44 : f32 to vector<1x128xf32>
      %c0_45 = arith.constant 0 : index
      %c0_46 = arith.constant 0 : index
      %64 = vector.load %arg10[%c0_45, %c0_46] : memref<1x128xf32, #tpu.memory_space<vmem>>, vector<1x128xf32>
      tpu.vector_store %arg10[%c0_45, %c0_46], %63 {strides = array<i32>} : memref<1x128xf32, #tpu.memory_space<vmem>>, vector<1x128xf32>,
    } else {
    }
    %c0 = arith.constant 0 : index
    %c0_1 = arith.constant 0 : index
    %3 = vector.load %arg1[%c0, %c0_1] : memref<8x32xf32, #tpu.memory_space<vmem>>, vector<8x32xf32>
    %c0_2 = arith.constant 0 : index
    %c0_3 = arith.constant 0 : index
    %4 = vector.load %arg3[%c0_2, %c0_3] : memref<32x128xf32, #tpu.memory_space<vmem>>, vector<32x128xf32>
    %cst = arith.constant dense<0.000000e+00> : vector<8x128xf32>
    %5 = tpu.matmul %3, %4, %cst {dimension_numbers = #tpu.dot_dimension_numbers<[1], [0], [0], [1], [0, 0, 1, 1], [], []>} : vector<8x32xf32>, vector<32x128xf32>, vector<8x128xf32> -> vector<8x128xf32>
    %c0_4 = arith.constant 0 : index
    %c0_5 = arith.constant 0 : index
    %6 = vector.load %arg5[%c0_4, %c0_5] : memref<128x1xf32, #tpu.memory_space<vmem>>, vector<128x1xf32>
    %cst_6 = arith.constant dense<0.000000e+00> : vector<8x1xf32>
    %7 = tpu.matmul %5, %6, %cst_6 {dimension_numbers = #tpu.dot_dimension_numbers<[1], [0], [0], [1], [0, 0, 1, 1], [], []>} : vector<8x128xf32>, vector<128x1xf32>, vector<8x1xf32> -> vector<8x1xf32>
    %c0_7 = arith.constant 0 : index
    %8 = memref.load %arg7[%c0_7] : memref<1xf32, #tpu.memory_space<smem>>
    %9 = vector.broadcast %8 : f32 to vector<8x1xf32>
    %10 = arith.addf %9, %7 : vector<8x1xf32>
    %cst_8 = arith.constant 0.000000e+00 : f32
    %11 = vector.broadcast %cst_8 : f32 to vector<8x1xf32>
    %12 = arith.cmpf ogt, %10, %11 : vector<8x1xf32>
    %cst_9 = arith.constant 2.000000e-01 : f32
    %13 = vector.broadcast %cst_9 : f32 to vector<8x1xf32>
    %14 = arith.mulf %13, %10 : vector<8x1xf32>
    %15 = arith.select %12, %10, %14 : vector<8x1xi1>, vector<8x1xf32>
    %16 = tpu.iota {dimensions = array<i32: 0>} : vector<8x1xi32>
    %c8_i32 = arith.constant 8 : i32
    %17 = arith.muli %arg0, %c8_i32 : i32
    %18 = vector.broadcast %17 : i32 to vector<8x1xi32>
    %19 = arith.addi %16, %18 : vector<8x1xi32>
    %c8_i32_10 = arith.constant 8 : i32
    %20 = vector.broadcast %c8_i32_10 : i32 to vector<8x1xi32>
    %21 = arith.cmpi slt, %19, %20 : vector<8x1xi32>
    %cst_11 = arith.constant -1.000000e+30 : f32
    %22 = vector.broadcast %cst_11 : f32 to vector<8x1xf32>
    %23 = arith.select %21, %15, %22 : vector<8x1xi1>, vector<8x1xf32>
    %c0_12 = arith.constant 0 : index
    %c0_13 = arith.constant 0 : index
    %24 = vector.load %arg8[%c0_12, %c0_13] : memref<1x1xf32, #tpu.memory_space<vmem>>, vector<1x1xf32>
    %cst_14 = arith.constant dense<0xFF800000> : vector<1xf32>
    %25 = vector.multi_reduction <maximumf>, %23, %cst_14 [0] : vector<8x1xf32> to vector<1xf32>
    %26 = vector.shape_cast %25 : vector<1xf32> to vector<1x1xf32>
    %27 = arith.maximumf %24, %26 : vector<1x1xf32>
    %28 = arith.subf %24, %27 : vector<1x1xf32>
    %29 = math.exp %28 : vector<1x1xf32>
    %30 = vector.broadcast %27 : vector<1x1xf32> to vector<8x1xf32>
    %31 = arith.subf %23, %30 : vector<8x1xf32>
    %32 = math.exp %31 : vector<8x1xf32>
    %c0_15 = arith.constant 0 : index
    %c0_16 = arith.constant 0 : index
    %33 = vector.load %arg9[%c0_15, %c0_16] : memref<1x1xf32, #tpu.memory_space<vmem>>, vector<1x1xf32>
    %34 = arith.mulf %29, %33 : vector<1x1xf32>
    %cst_17 = arith.constant dense<0.000000e+00> : vector<1xf32>
    %35 = vector.multi_reduction <add>, %32, %cst_17 [0] : vector<8x1xf32> to vector<1xf32>
    %36 = vector.shape_cast %35 : vector<1xf32> to vector<1x1xf32>
    %37 = arith.addf %34, %36 : vector<1x1xf32>
    %c0_18 = arith.constant 0 : index
    %c0_19 = arith.constant 0 : index
    %38 = vector.load %arg9[%c0_18, %c0_19] : memref<1x1xf32, #tpu.memory_space<vmem>>, vector<1x1xf32>
    tpu.vector_store %arg9[%c0_18, %c0_19], %37 {strides = array<i32>} : memref<1x1xf32, #tpu.memory_space<vmem>>, vector<1x1xf32>,
    %cst_20 = arith.constant dense<0.000000e+00> : vector<1x128xf32>
    %39 = tpu.matmul %32, %5, %cst_20 {dimension_numbers = #tpu.dot_dimension_numbers<[0], [0], [1], [1], [0, 1, 1, 1], [], []>} : vector<8x1xf32>, vector<8x128xf32>, vector<1x128xf32> -> vector<1x128xf32>
    %c0_21 = arith.constant 0 : index
    %c0_22 = arith.constant 0 : index
    %40 = vector.load %arg10[%c0_21, %c0_22] : memref<1x128xf32, #tpu.memory_space<vmem>>, vector<1x128xf32>
    %41 = vector.broadcast %29 : vector<1x1xf32> to vector<1x128xf32>
    %42 = arith.mulf %41, %40 : vector<1x128xf32>
    %43 = arith.addf %42, %39 : vector<1x128xf32>
    %c0_23 = arith.constant 0 : index
    %c0_24 = arith.constant 0 : index
    %44 = vector.load %arg10[%c0_23, %c0_24] : memref<1x128xf32, #tpu.memory_space<vmem>>, vector<1x128xf32>
    tpu.vector_store %arg10[%c0_23, %c0_24], %43 {strides = array<i32>} : memref<1x128xf32, #tpu.memory_space<vmem>>, vector<1x128xf32>,
    %c0_25 = arith.constant 0 : index
    %c0_26 = arith.constant 0 : index
    %45 = vector.load %arg8[%c0_25, %c0_26] : memref<1x1xf32, #tpu.memory_space<vmem>>, vector<1x1xf32>
    tpu.vector_store %arg8[%c0_25, %c0_26], %27 {strides = array<i32>} : memref<1x1xf32, #tpu.memory_space<vmem>>, vector<1x1xf32>,
    %c0_i32_27 = arith.constant 0 : i32
    %46 = arith.cmpi eq, %arg0, %c0_i32_27 : i32
    %47 = arith.extui %46 : i1 to i32
    %c0_i32_28 = arith.constant 0 : i32
    %48 = arith.cmpi ne, %47, %c0_i32_28 : i32
    scf.if %48 {
      %c0_29 = arith.constant 0 : index
      %c0_30 = arith.constant 0 : index
      %49 = vector.load %arg10[%c0_29, %c0_30] : memref<1x128xf32, #tpu.memory_space<vmem>>, vector<1x128xf32>
      %c0_31 = arith.constant 0 : index
      %c0_32 = arith.constant 0 : index
      %50 = vector.load %arg9[%c0_31, %c0_32] : memref<1x1xf32, #tpu.memory_space<vmem>>, vector<1x1xf32>
      %51 = tpu.reciprocal %50 : vector<1x1xf32> -> vector<1x1xf32>
      %52 = vector.broadcast %51 : vector<1x1xf32> to vector<1x128xf32>
      %53 = arith.mulf %49, %52 : vector<1x128xf32>
      %cst_33 = arith.constant 0.000000e+00 : f32
      %54 = vector.broadcast %cst_33 : f32 to vector<1x128xf32>
      %55 = arith.cmpf ogt, %53, %54 : vector<1x128xf32>
      %56 = math.exp %53 : vector<1x128xf32>
      %cst_34 = arith.constant 1.000000e+00 : f32
      %57 = vector.broadcast %cst_34 : f32 to vector<1x128xf32>
      %58 = arith.subf %56, %57 : vector<1x128xf32>
      %59 = arith.select %55, %53, %58 : vector<1x128xi1>, vector<1x128xf32>
      %c0_35 = arith.constant 0 : index
      %c0_36 = arith.constant 0 : index
      %60 = vector.load %arg6[%c0_35, %c0_36] : memref<1x128xf32, #tpu.memory_space<vmem>>, vector<1x128xf32>
      tpu.vector_store %arg6[%c0_35, %c0_36], %59 {strides = array<i32>} : memref<1x128xf32, #tpu.memory_space<vmem>>, vector<1x128xf32>,
    } else {
    }
    return
  }
  func.func @transform_0(%arg0: i32) -> (i32, i32) {
    %c0_i32 = arith.constant 0 : i32
    %c0_i32_0 = arith.constant 0 : i32
    return %arg0, %c0_i32 : i32, i32
  }
  func.func @transform_1(%arg0: i32) -> (i32, i32) {
    %c0_i32 = arith.constant 0 : i32
    %c0_i32_0 = arith.constant 0 : i32
    %c0_i32_1 = arith.constant 0 : i32
    return %c0_i32, %c0_i32_0 : i32, i32
  }
  func.func @transform_2(%arg0: i32) -> (i32, i32) {
    %c0_i32 = arith.constant 0 : i32
    %c0_i32_0 = arith.constant 0 : i32
    %c0_i32_1 = arith.constant 0 : i32
    return %c0_i32, %c0_i32_0 : i32, i32
  }
  func.func @transform_3(%arg0: i32) -> (i32, i32) {
    %c0_i32 = arith.constant 0 : i32
    %c0_i32_0 = arith.constant 0 : i32
    %c0_i32_1 = arith.constant 0 : i32
    return %c0_i32, %c0_i32_0 : i32, i32
  }
  func.func @transform_4(%arg0: i32) -> (i32, i32) {
    %c0_i32 = arith.constant 0 : i32
    %c0_i32_0 = arith.constant 0 : i32
    %c0_i32_1 = arith.constant 0 : i32
    return %c0_i32, %c0_i32_0 : i32, i32
  }
  func.func @transform_5(%arg0: i32) -> (i32, i32) {
    %c0_i32 = arith.constant 0 : i32
    %c0_i32_0 = arith.constant 0 : i32
    %c0_i32_1 = arith.constant 0 : i32
    return %c0_i32, %c0_i32_0 : i32, i32
  }
}

</mosaic_0001>

<llo_original>
// kernel: tpu_custom_call.1
$region0: #{tpu_custom_call.1}
  #allocation0 [shape = 'u32[]', space=smem, size = 0x4, offset = 0x4, fixed_abs, tag = 'smem constant byte address 0x4 - core index']
  #allocation1 [shape = 'u32[144,128]{1,0:T(1,128)}', space=vmem, size = 0x12000, scoped, tag = 'internal scratch']
  #allocation2 [shape = 'f32[1]{0:T(128)}', space=smem, size = 0x200, scoped, tag = 'scratch operand']
  #allocation3 [shape = 'f32[1,1]{1,0:T(1,128)}', space=vmem, size = 0x200, scoped, tag = 'scratch operand']
  #allocation4 [shape = 'f32[1,1]{1,0:T(1,128)}', space=vmem, size = 0x200, scoped, tag = 'scratch operand']
  #allocation5 [shape = 'f32[1,128]{1,0:T(1,128)}', space=vmem, size = 0x200, scoped, tag = 'scratch operand']
  %s0 = inlined_call_operand.vmem [shape: f32[8,32], index: 0, kind: input, shape index: {}]
  %s1 = inlined_call_operand.vmem [shape: f32[1,32], index: 1, kind: input, shape index: {}]
  %s2 = inlined_call_operand.vmem [shape: f32[32,128], index: 2, kind: input, shape index: {}]
  %s3 = inlined_call_operand.vmem [shape: f32[1,128], index: 3, kind: input, shape index: {}]
  %s4 = inlined_call_operand.vmem [shape: f32[128,1], index: 4, kind: input, shape index: {}]
  %s5 = inlined_call_operand.hbm [shape: f32[1,128], index: 5, kind: output, shape index: {}]
  %s6 = sld [smem:[#allocation0]]
  $region38: #{tpu_custom_call.1} parent=0
    _
  %s8 = ssub.s32 1, %s6
  %s9 = scalar_select 0, %s8, %s6
  $region1: #{tpu_custom_call.1} parent=0
    #allocation6 [shape = 'u8[512]{0}', space=vmem, size = 0x400, scoped, tag = 'output window, operand 0, single buffered']
    #allocation7 [shape = 's32[1]{0}', space=sflag, size = 0x4, scoped, tag = 'scoped memory for tpu_custom_call.1']
    %10 = vsyncpa [#allocation7], 0
    // Predicated region
    $region2: #{tpu_custom_call.1} parent=1 // pred_check
      _
    $region3: #{tpu_custom_call.1} parent=1 // pred_check_branch
      %12 = sbr.rel (0) target = $region5
    $region4: #{tpu_custom_call.1} parent=1 // pred_region
      _
    $region5: #{tpu_custom_call.1} parent=1 // pred_fallthru
      _
    // Predicated region
    $region6: #{tpu_custom_call.1} parent=1 // pred_check
      _
    $region7: #{tpu_custom_call.1} parent=1 // pred_check_branch
      %14 = sbr.rel (0) target = $region9
    $region8: #{tpu_custom_call.1} parent=1 // pred_region
      _
    $region9: #{tpu_custom_call.1} parent=1 // pred_fallthru
      _
    // Predicated region
    $region10: #{tpu_custom_call.1} parent=1 // pred_check
      _
    $region11: #{tpu_custom_call.1} parent=1 // pred_check_branch
      %16 = sbr.rel (0) target = $region13
    $region12: #{tpu_custom_call.1} parent=1 // pred_region
      _
    $region13: #{tpu_custom_call.1} parent=1 // pred_fallthru
      _
    // Predicated region
    $region14: #{tpu_custom_call.1} parent=1 // pred_check
      _
    $region15: #{tpu_custom_call.1} parent=1 // pred_check_branch
      %18 = sbr.rel (0) target = $region17
    $region16: #{tpu_custom_call.1} parent=1 // pred_region
      _
    $region17: #{tpu_custom_call.1} parent=1 // pred_fallthru
      _
    // Predicated region
    $region18: #{tpu_custom_call.1} parent=1 // pred_check
      _
    $region19: #{tpu_custom_call.1} parent=1 // pred_check_branch
      %20 = sbr.rel (0) target = $region21
    $region20: #{tpu_custom_call.1} parent=1 // pred_region
      _
    $region21: #{tpu_custom_call.1} parent=1 // pred_fallthru
      _
    %p21 = scmp.eq.s32.totalorder 0, 0
    // Predicated region
    $region22: #{tpu_custom_call.1} parent=1 // pred_check
      %p22 = pneg %p21
    $region23: #{tpu_custom_call.1} parent=1 // pred_check_branch
      %24 = sbr.rel (%p22) target = $region25
    $region24: #{tpu_custom_call.1} parent=1 // pred_region
      %v25 = vld [vmem:[%s1] sm:$0x1]
      %v26 = vld [vmem:[%s2] sm:$0xff]
      %v27 = vld [vmem:[%s2 + $0x8] sm:$0xff]
      %v28 = vld [vmem:[%s2 + $0x10] sm:$0xff]
      %v29 = vld [vmem:[%s2 + $0x18] sm:$0xff]
      %vm30 = vcmask 261120
      %v32 = vsel %vm30, %v25, 0
      %34 = vmatprep.subr.mxu0 0.0
      %35 = vmatpush1.msra.mxu0 %v26
      %36 = vmatprep.subr.mxu0 0.0
      %37 = vmatpush1.msra.mxu0 %v27
      %38 = vmatprep.subr.mxu0 0.0
      %39 = vmatpush1.msra.mxu0 %v28
      %40 = vmatprep.subr.mxu0 0.0
      %41 = vmatpush1.msra.mxu0 %v29
      %42 = vmatprep.subr.mxu0 0.0
      %43 = vmatpush1.msra.mxu0 0.0
      %44 = vmatprep.subr.mxu0 0.0
      %45 = vmatpush1.msra.mxu0 0.0
      %46 = vmatprep.subr.mxu0 0.0
      %47 = vmatpush1.msra.mxu0 0.0
      %48 = vmatprep.subr.mxu0 0.0
      %49 = vmatpush1.msra.mxu0 0.0
      %50 = vmatprep.subr.mxu0 0.0
      %51 = vmatpush1.msra.mxu0 0.0
      %52 = vmatprep.subr.mxu0 0.0
      %53 = vmatpush1.msra.mxu0 0.0
      %54 = vmatprep.subr.mxu0 0.0
      %55 = vmatpush1.msra.mxu0 0.0
      %56 = vmatprep.subr.mxu0 0.0
      %57 = vmatpush1.msra.mxu0 0.0
      %58 = vmatprep.subr.mxu0 0.0
      %59 = vmatpush1.msra.mxu0 0.0
      %60 = vmatprep.subr.mxu0 0.0
      %61 = vmatpush1.msra.mxu0 0.0
      %62 = vmatprep.subr.mxu0 0.0
      %63 = vmatpush1.msra.mxu0 0.0
      %64 = vmatprep.subr.mxu0 0.0
      %65 = vmatpush1.msra.mxu0 0.0
      %66 = vmatprep.subr.mxu0 0.0
      %67 = vmatpush1.msra.mxu0 0.0
      %68 = vmatprep.subr.mxu0 0.0
      %69 = vmatpush1.msra.mxu0 0.0
      %70 = vmatprep.subr.mxu0 0.0
      %71 = vmatpush1.msra.mxu0 0.0
      %72 = vmatprep.subr.mxu0 0.0
      %73 = vmatpush1.msra.mxu0 0.0
      %74 = vmatprep.subr.mxu0 0.0
      %75 = vmatpush1.msra.mxu0 0.0
      %76 = vmatprep.subr.mxu0 0.0
      %77 = vmatpush1.msra.mxu0 0.0
      %78 = vmatprep.subr.mxu0 0.0
      %79 = vmatpush1.msra.mxu0 0.0
      %80 = vmatprep.subr.mxu0 0.0
      %81 = vmatpush1.msra.mxu0 0.0
      %82 = vmatprep.subr.mxu0 0.0
      %83 = vmatpush1.msra.mxu0 0.0
      %84 = vmatprep.subr.mxu0 0.0
      %85 = vmatpush1.msra.mxu0 0.0
      %86 = vmatprep.subr.mxu0 0.0
      %87 = vmatpush1.msra.mxu0 0.0
      %88 = vmatprep.subr.mxu0 0.0
      %89 = vmatpush1.msra.mxu0 0.0
      %90 = vmatprep.subr.mxu0 0.0
      %91 = vmatpush1.msra.mxu0 0.0
      %92 = vmatprep.subr.mxu0 0.0
      %93 = vmatpush1.msra.mxu0 0.0
      %94 = vmatprep.subr.mxu0 0.0
      %95 = vmatpush1.msra.mxu0 0.0
      %96 = vmatprep.subr.mxu0 0.0
      %97 = vmatpush1.msra.mxu0 0.0
      %98 = vmatprep.mubr.f32.mxu0 0.0
      %99 = vmatmul.mubr.f32.gmra.mrb[0].mxu0 %v32
      %v100 = vpop.f32.mrb[0].mxu0
      %v101 = vadd.f32 0.0, %v100
      %v102 = vpop.f32.mrb[0].mxu0
      %103 = vdwg.mxu0
      %v104 = vld [vmem:[%s3] sm:$0x1]
      %v105 = vmul.f32 %v101, %v104
      %vm106 = vcmask 1040384
      %v107 = vsel %vm106, %v105, 0.0
      %108 = vadd.xlane.f32.xlu0 %v107
      %v109 = vpop.xlane.xlu0 %108
      %v110 = vrot.slane %v109, 4
      %v111 = vadd.f32 %v109, %v110
      %v112 = vrot.slane %v111, 2
      %v113 = vadd.f32 %v111, %v112
      %v114 = vrot.slane %v113, 1
      %v115 = vadd.f32 %v113, %v114
      %s116 = vtos %v115
      %s117 = scalar_lea.smem [#allocation2], 0
      %118 = sst [smem:[%s117]] %s116
      %vm119 = vcmask 0
      %120 = vst.msk [vmem:[#allocation3] sm:$0x1] %vm119, -inf
      %121 = vst.msk [vmem:[#allocation4] sm:$0x1] %vm119, 0.0
      %122 = vst [vmem:[#allocation5] sm:$0x1] 0.0
    $region25: #{tpu_custom_call.1} parent=1 // pred_fallthru
      _
    %v123 = vld [vmem:[%s0] sm:$0xff]
    %v124 = vld [vmem:[%s2] sm:$0xff]
    %v125 = vld [vmem:[%s2 + $0x8] sm:$0xff]
    %v126 = vld [vmem:[%s2 + $0x10] sm:$0xff]
    %v127 = vld [vmem:[%s2 + $0x18] sm:$0xff]
    %vm128 = vcmask 261120
    %v130 = vsel %vm128, %v123, 0
    %132 = vmatprep.subr.mxu0 0.0
    %133 = vmatpush1.msra.mxu0 %v124
    %134 = vmatprep.subr.mxu0 0.0
    %135 = vmatpush1.msra.mxu0 %v125
    %136 = vmatprep.subr.mxu0 0.0
    %137 = vmatpush1.msra.mxu0 %v126
    %138 = vmatprep.subr.mxu0 0.0
    %139 = vmatpush1.msra.mxu0 %v127
    %140 = vmatprep.subr.mxu0 0.0
    %141 = vmatpush1.msra.mxu0 0.0
    %142 = vmatprep.subr.mxu0 0.0
    %143 = vmatpush1.msra.mxu0 0.0
    %144 = vmatprep.subr.mxu0 0.0
    %145 = vmatpush1.msra.mxu0 0.0
    %146 = vmatprep.subr.mxu0 0.0
    %147 = vmatpush1.msra.mxu0 0.0
    %148 = vmatprep.subr.mxu0 0.0
    %149 = vmatpush1.msra.mxu0 0.0
    %150 = vmatprep.subr.mxu0 0.0
    %151 = vmatpush1.msra.mxu0 0.0
    %152 = vmatprep.subr.mxu0 0.0
    %153 = vmatpush1.msra.mxu0 0.0
    %154 = vmatprep.subr.mxu0 0.0
    %155 = vmatpush1.msra.mxu0 0.0
    %156 = vmatprep.subr.mxu0 0.0
    %157 = vmatpush1.msra.mxu0 0.0
    %158 = vmatprep.subr.mxu0 0.0
    %159 = vmatpush1.msra.mxu0 0.0
    %160 = vmatprep.subr.mxu0 0.0
    %161 = vmatpush1.msra.mxu0 0.0
    %162 = vmatprep.subr.mxu0 0.0
    %163 = vmatpush1.msra.mxu0 0.0
    %164 = vmatprep.subr.mxu0 0.0
    %165 = vmatpush1.msra.mxu0 0.0
    %166 = vmatprep.subr.mxu0 0.0
    %167 = vmatpush1.msra.mxu0 0.0
    %168 = vmatprep.subr.mxu0 0.0
    %169 = vmatpush1.msra.mxu0 0.0
    %170 = vmatprep.subr.mxu0 0.0
    %171 = vmatpush1.msra.mxu0 0.0
    %172 = vmatprep.subr.mxu0 0.0
    %173 = vmatpush1.msra.mxu0 0.0
    %174 = vmatprep.subr.mxu0 0.0
    %175 = vmatpush1.msra.mxu0 0.0
    %176 = vmatprep.subr.mxu0 0.0
    %177 = vmatpush1.msra.mxu0 0.0
    %178 = vmatprep.subr.mxu0 0.0
    %179 = vmatpush1.msra.mxu0 0.0
    %180 = vmatprep.subr.mxu0 0.0
    %181 = vmatpush1.msra.mxu0 0.0
    %182 = vmatprep.subr.mxu0 0.0
    %183 = vmatpush1.msra.mxu0 0.0
    %184 = vmatprep.subr.mxu0 0.0
    %185 = vmatpush1.msra.mxu0 0.0
    %186 = vmatprep.subr.mxu0 0.0
    %187 = vmatpush1.msra.mxu0 0.0
    %188 = vmatprep.subr.mxu0 0.0
    %189 = vmatpush1.msra.mxu0 0.0
    %190 = vmatprep.subr.mxu0 0.0
    %191 = vmatpush1.msra.mxu0 0.0
    %192 = vmatprep.subr.mxu0 0.0
    %193 = vmatpush1.msra.mxu0 0.0
    %194 = vmatprep.subr.mxu0 0.0
    %195 = vmatpush1.msra.mxu0 0.0
    %196 = vmatprep.mubr.f32.mxu0 0.0
    %197 = vmatmul.mubr.f32.gmra.mrb[0].mxu0 %v130
    %v198 = vpop.f32.mrb[0].mxu0
    %v199 = vadd.f32 0.0, %v198
    %v200 = vpop.f32.mrb[0].mxu0
    %201 = vdwg.mxu0
    %v202 = vld [vmem:[%s4] sm:$0xff]
    %v203 = vld [vmem:[%s4 + $0x8] sm:$0xff]
    %v204 = vld [vmem:[%s4 + $0x10] sm:$0xff]
    %v205 = vld [vmem:[%s4 + $0x18] sm:$0xff]
    %v206 = vld [vmem:[%s4 + $0x20] sm:$0xff]
    %v207 = vld [vmem:[%s4 + $0x28] sm:$0xff]
    %v208 = vld [vmem:[%s4 + $0x30] sm:$0xff]
    %v209 = vld [vmem:[%s4 + $0x38] sm:$0xff]
    %v210 = vld [vmem:[%s4 + $0x40] sm:$0xff]
    %v211 = vld [vmem:[%s4 + $0x48] sm:$0xff]
    %v212 = vld [vmem:[%s4 + $0x50] sm:$0xff]
    %v213 = vld [vmem:[%s4 + $0x58] sm:$0xff]
    %v214 = vld [vmem:[%s4 + $0x60] sm:$0xff]
    %v215 = vld [vmem:[%s4 + $0x68] sm:$0xff]
    %v216 = vld [vmem:[%s4 + $0x70] sm:$0xff]
    %v217 = vld [vmem:[%s4 + $0x78] sm:$0xff]
    %218 = vmatprep.subr.mxu0 0.0
    %219 = vmatpush1.msra.mxu0 %v202
    %220 = vmatprep.subr.mxu0 0.0
    %221 = vmatpush1.msra.mxu0 %v203
    %222 = vmatprep.subr.mxu0 0.0
    %223 = vmatpush1.msra.mxu0 %v204
    %224 = vmatprep.subr.mxu0 0.0
    %225 = vmatpush1.msra.mxu0 %v205
    %226 = vmatprep.subr.mxu0 0.0
    %227 = vmatpush1.msra.mxu0 %v206
    %228 = vmatprep.subr.mxu0 0.0
    %229 = vmatpush1.msra.mxu0 %v207
    %230 = vmatprep.subr.mxu0 0.0
    %231 = vmatpush1.msra.mxu0 %v208
    %232 = vmatprep.subr.mxu0 0.0
    %233 = vmatpush1.msra.mxu0 %v209
    %234 = vmatprep.subr.mxu0 0.0
    %235 = vmatpush1.msra.mxu0 %v210
    %236 = vmatprep.subr.mxu0 0.0
    %237 = vmatpush1.msra.mxu0 %v211
    %238 = vmatprep.subr.mxu0 0.0
    %239 = vmatpush1.msra.mxu0 %v212
    %240 = vmatprep.subr.mxu0 0.0
    %241 = vmatpush1.msra.mxu0 %v213
    %242 = vmatprep.subr.mxu0 0.0
    %243 = vmatpush1.msra.mxu0 %v214
    %244 = vmatprep.subr.mxu0 0.0
    %245 = vmatpush1.msra.mxu0 %v215
    %246 = vmatprep.subr.mxu0 0.0
    %247 = vmatpush1.msra.mxu0 %v216
    %248 = vmatprep.subr.mxu0 0.0
    %249 = vmatpush1.msra.mxu0 %v217
    %250 = vmatprep.subr.mxu0 0.0
    %251 = vmatpush1.msra.mxu0 0.0
    %252 = vmatprep.subr.mxu0 0.0
    %253 = vmatpush1.msra.mxu0 0.0
    %254 = vmatprep.subr.mxu0 0.0
    %255 = vmatpush1.msra.mxu0 0.0
    %256 = vmatprep.subr.mxu0 0.0
    %257 = vmatpush1.msra.mxu0 0.0
    %258 = vmatprep.subr.mxu0 0.0
    %259 = vmatpush1.msra.mxu0 0.0
    %260 = vmatprep.subr.mxu0 0.0
    %261 = vmatpush1.msra.mxu0 0.0
    %262 = vmatprep.subr.mxu0 0.0
    %263 = vmatpush1.msra.mxu0 0.0
    %264 = vmatprep.subr.mxu0 0.0
    %265 = vmatpush1.msra.mxu0 0.0
    %266 = vmatprep.subr.mxu0 0.0
    %267 = vmatpush1.msra.mxu0 0.0
    %268 = vmatprep.subr.mxu0 0.0
    %269 = vmatpush1.msra.mxu0 0.0
    %270 = vmatprep.subr.mxu0 0.0
    %271 = vmatpush1.msra.mxu0 0.0
    %272 = vmatprep.subr.mxu0 0.0
    %273 = vmatpush1.msra.mxu0 0.0
    %274 = vmatprep.subr.mxu0 0.0
    %275 = vmatpush1.msra.mxu0 0.0
    %276 = vmatprep.subr.mxu0 0.0
    %277 = vmatpush1.msra.mxu0 0.0
    %278 = vmatprep.subr.mxu0 0.0
    %279 = vmatpush1.msra.mxu0 0.0
    %280 = vmatprep.subr.mxu0 0.0
    %281 = vmatpush1.msra.mxu0 0.0
    %282 = vmatprep.mubr.f32.mxu0 0.0
    %283 = vmatmul.mubr.f32.gmra.mrb[0].mxu0 %v199
    %v284 = vpop.f32.mrb[0].mxu0
    %v285 = vadd.f32 0.0, %v284
    %v286 = vpop.f32.mrb[0].mxu0
    %287 = vdwg.mxu0
    %s288 = sld [smem:[#allocation2]]
    %v289 = vstv %s288
    %v290 = vadd.f32 %v289, %v285
    %vm291 = vcmp.gt.f32.partialorder %v290, 0.0
    %v292 = vmul.f32 %v290, 0.2
    %v293 = vsel %vm291, %v290, %v292
    %v294 = vlaneseq
    %v295 = vshrl.u32 %v294, 7
    %s296 = smul.u32 0, 8
    %v297 = vstv %s296
    %v298 = vadd.s32 %v295, %v297
    %vm299 = vcmp.lt.s32.totalorder %v298, 8
    %v300 = vsel %vm299, %v293, -1e+30
    %v301 = vld [vmem:[#allocation3] sm:$0x1]
    %vm302 = vcmask 7168
    %v303 = vsel %vm302, %v300, -inf
    %v304 = vrot.slane %v303, 4
    %v305 = vmax.f32 %v303, %v304
    %v306 = vrot.slane %v305, 2
    %v307 = vmax.f32 %v305, %v306
    %v308 = vrot.slane %v307, 1
    %v309 = vmax.f32 %v307, %v308
    %v310 = vmax.f32 %v301, %v309
    %v311 = vsub.f32 %v301, %v310
    %v312 = vmul.f32 %v311, 1.442695
    %v313 = vpow.pop %v312
    %v315 = vlaneseq
    %v316 = vshrl.u32 %v315, 7
    %v317 = vsub.s32 0, %v316
    %v318 = vrot.slane %v310, %v317
    %v320 = vsub.f32 %v300, %v318
    %v321 = vmul.f32 %v320, 1.442695
    %v322 = vpow.pop %v321
    %v323 = vld [vmem:[#allocation4] sm:$0x1]
    %v324 = vmul.f32 %v313, %v323
    %v325 = vsel %vm302, %v322, 0.0
    %v326 = vrot.slane %v325, 4
    %v327 = vadd.f32 %v325, %v326
    %v328 = vrot.slane %v327, 2
    %v329 = vadd.f32 %v327, %v328
    %v330 = vrot.slane %v329, 1
    %v331 = vadd.f32 %v329, %v330
    %v332 = vadd.f32 %v324, %v331
    %vm333 = vcmask 0
    %334 = vst.msk [vmem:[#allocation4] sm:$0x1] %vm333, %v332
    %335 = vxpose.xlu0.b32.start [1/16] %v322, 128
    %336 = vxpose.xlu0.b32.cont [2/16] 0.0, 128
    %337 = vxpose.xlu0.b32.cont [3/16] 0.0, 128
    %338 = vxpose.xlu0.b32.cont [4/16] 0.0, 128
    %339 = vxpose.xlu0.b32.cont [5/16] 0.0, 128
    %340 = vxpose.xlu0.b32.cont [6/16] 0.0, 128
    %341 = vxpose.xlu0.b32.cont [7/16] 0.0, 128
    %342 = vxpose.xlu0.b32.cont [8/16] 0.0, 128
    %343 = vxpose.xlu0.b32.cont [9/16] 0.0, 128
    %344 = vxpose.xlu0.b32.cont [10/16] 0.0, 128
    %345 = vxpose.xlu0.b32.cont [11/16] 0.0, 128
    %346 = vxpose.xlu0.b32.cont [12/16] 0.0, 128
    %347 = vxpose.xlu0.b32.cont [13/16] 0.0, 128
    %348 = vxpose.xlu0.b32.cont [14/16] 0.0, 128
    %349 = vxpose.xlu0.b32.cont [15/16] 0.0, 128
    %350 = vxpose.xlu0.b32.end [16/16] 0.0, 128
    %v351 = vpop.trf.xlu0
    %v352 = vpop.trf.xlu0
    %v353 = vpop.trf.xlu0
    %v354 = vpop.trf.xlu0
    %v355 = vpop.trf.xlu0
    %v356 = vpop.trf.xlu0
    %v357 = vpop.trf.xlu0
    %v358 = vpop.trf.xlu0
    %v359 = vpop.trf.xlu0
    %v360 = vpop.trf.xlu0
    %v361 = vpop.trf.xlu0
    %v362 = vpop.trf.xlu0
    %v363 = vpop.trf.xlu0
    %v364 = vpop.trf.xlu0
    %v365 = vpop.trf.xlu0
    %v366 = vpop.trf.xlu0
    %vm367 = vcmask 64512
    %v369 = vsel %vm367, %v351, 0
    %371 = vmatprep.subr.mxu0 0.0
    %372 = vmatpush1.msra.mxu0 %v199
    %373 = vmatprep.subr.mxu0 0.0
    %374 = vmatpush1.msra.mxu0 0.0
    %375 = vmatprep.subr.mxu0 0.0
    %376 = vmatpush1.msra.mxu0 0.0
    %377 = vmatprep.subr.mxu0 0.0
    %378 = vmatpush1.msra.mxu0 0.0
    %379 = vmatprep.subr.mxu0 0.0
    %380 = vmatpush1.msra.mxu0 0.0
    %381 = vmatprep.subr.mxu0 0.0
    %382 = vmatpush1.msra.mxu0 0.0
    %383 = vmatprep.subr.mxu0 0.0
    %384 = vmatpush1.msra.mxu0 0.0
    %385 = vmatprep.subr.mxu0 0.0
    %386 = vmatpush1.msra.mxu0 0.0
    %387 = vmatprep.subr.mxu0 0.0
    %388 = vmatpush1.msra.mxu0 0.0
    %389 = vmatprep.subr.mxu0 0.0
    %390 = vmatpush1.msra.mxu0 0.0
    %391 = vmatprep.subr.mxu0 0.0
    %392 = vmatpush1.msra.mxu0 0.0
    %393 = vmatprep.subr.mxu0 0.0
    %394 = vmatpush1.msra.mxu0 0.0
    %395 = vmatprep.subr.mxu0 0.0
    %396 = vmatpush1.msra.mxu0 0.0
    %397 = vmatprep.subr.mxu0 0.0
    %398 = vmatpush1.msra.mxu0 0.0
    %399 = vmatprep.subr.mxu0 0.0
    %400 = vmatpush1.msra.mxu0 0.0
    %401 = vmatprep.subr.mxu0 0.0
    %402 = vmatpush1.msra.mxu0 0.0
    %403 = vmatprep.subr.mxu0 0.0
    %404 = vmatpush1.msra.mxu0 0.0
    %405 = vmatprep.subr.mxu0 0.0
    %406 = vmatpush1.msra.mxu0 0.0
    %407 = vmatprep.subr.mxu0 0.0
    %408 = vmatpush1.msra.mxu0 0.0
    %409 = vmatprep.subr.mxu0 0.0
    %410 = vmatpush1.msra.mxu0 0.0
    %411 = vmatprep.subr.mxu0 0.0
    %412 = vmatpush1.msra.mxu0 0.0
    %413 = vmatprep.subr.mxu0 0.0
    %414 = vmatpush1.msra.mxu0 0.0
    %415 = vmatprep.subr.mxu0 0.0
    %416 = vmatpush1.msra.mxu0 0.0
    %417 = vmatprep.subr.mxu0 0.0
    %418 = vmatpush1.msra.mxu0 0.0
    %419 = vmatprep.subr.mxu0 0.0
    %420 = vmatpush1.msra.mxu0 0.0
    %421 = vmatprep.subr.mxu0 0.0
    %422 = vmatpush1.msra.mxu0 0.0
    %423 = vmatprep.subr.mxu0 0.0
    %424 = vmatpush1.msra.mxu0 0.0
    %425 = vmatprep.subr.mxu0 0.0
    %426 = vmatpush1.msra.mxu0 0.0
    %427 = vmatprep.subr.mxu0 0.0
    %428 = vmatpush1.msra.mxu0 0.0
    %429 = vmatprep.subr.mxu0 0.0
    %430 = vmatpush1.msra.mxu0 0.0
    %431 = vmatprep.subr.mxu0 0.0
    %432 = vmatpush1.msra.mxu0 0.0
    %433 = vmatprep.subr.mxu0 0.0
    %434 = vmatpush1.msra.mxu0 0.0
    %435 = vmatprep.mubr.f32.mxu0 0.0
    %436 = vmatmul.mubr.f32.gmra.mrb[0].mxu0 %v369
    %v437 = vpop.f32.mrb[0].mxu0
    %v438 = vadd.f32 0.0, %v437
    %v439 = vpop.f32.mrb[0].mxu0
    %440 = vdwg.mxu0
    %v441 = vld [vmem:[#allocation5] sm:$0x1]
    %443 = vset.pattern.permute.xlu0 0
    %444 = vperm.xlu0 %443, %v313
    %v445 = vpop.permute.xlu0 %444
    %v447 = vlaneseq
    %v448 = vshrl.u32 %v447, 7
    %v449 = vsub.s32 0, %v448
    %v450 = vrot.slane %v445, %v449
    %v451 = vmul.f32 %v450, %v441
    %v452 = vadd.f32 %v451, %v438
    %453 = vst [vmem:[#allocation5] sm:$0x1] %v452
    %454 = vst.msk [vmem:[#allocation3] sm:$0x1] %vm333, %v310
    // Predicated region
    $region26: #{tpu_custom_call.1} parent=1 // pred_check
      %p455 = pneg %p21
    $region27: #{tpu_custom_call.1} parent=1 // pred_check_branch
      %457 = sbr.rel (%p455) target = $region29
    $region28: #{tpu_custom_call.1} parent=1 // pred_region
      %v458 = vld [vmem:[#allocation5] sm:$0x1]
      %v459 = vld [vmem:[#allocation4] sm:$0x1]
      %v460 = vrcp.pop %v459
      %462 = vset.pattern.permute.xlu0 0
      %463 = vperm.xlu0 %462, %v460
      %v464 = vpop.permute.xlu0 %463
      %v466 = vlaneseq
      %v467 = vshrl.u32 %v466, 7
      %v468 = vsub.s32 0, %v467
      %v469 = vrot.slane %v464, %v468
      %v470 = vmul.f32 %v458, %v469
      %vm471 = vcmp.gt.f32.partialorder %v470, 0.0
      %v472 = vmul.f32 %v470, 1.442695
      %v473 = vpow.pop %v472
      %v474 = vsub.f32 %v473, 1.0
      %v475 = vsel %vm471, %v470, %v474
      %476 = vst [vmem:[#allocation6] sm:$0x1] %v475
    $region29: #{tpu_custom_call.1} parent=1 // pred_fallthru
      _
    // Predicated region
    $region30: #{tpu_custom_call.1} parent=1 // pred_check
      _
    $region31: #{tpu_custom_call.1} parent=1 // pred_check_branch
      %478 = sbr.rel (0) target = $region33
    $region32: #{tpu_custom_call.1} parent=1 // pred_region
      %s480 = ssub.s32 16, 16
      %481 = vsyncadd [#allocation7], %s480
      %s483 = sshll.u32 [#allocation6], 4
      %s484 = int_to_ptr.vmem [resolvable:$true] %s483
      %486 = dma.vmem_to_hbm [thread:$0]  %s484, 16, %s5, [#allocation7]
    $region33: #{tpu_custom_call.1} parent=1 // pred_fallthru
      _
    // Predicated region
    $region34: #{tpu_custom_call.1} parent=1 // pred_check
      _
    $region35: #{tpu_custom_call.1} parent=1 // pred_check_branch
      %488 = sbr.rel (0) target = $region37
    $region36: #{tpu_custom_call.1} parent=1 // pred_region
      %489 = dma.done [#allocation7], 16
    $region37: #{tpu_custom_call.1} parent=1 // pred_fallthru
      _
    %490 = vsyncpa [#allocation7], 1

</llo_original>
